<compile_context>
chip_gen: v7x
topology: tpu7x:2x2x1
jax: 0.10.0
libtpu: 0.0.40
codegen_flags: <defaults>
</compile_context>

<pallas_src>
import jax
import jax.numpy as jnp
from jax.experimental import pallas as pl
from jax.experimental.pallas import tpu as pltpu


def _round_up(x, m):
    return (x + m - 1) // m * m


# ----------------------------------------------------------------------------
# Fused kernel: assemble [z | r | 0] in VMEM -> ReLU(xW1+b1) -> ReLU(.W2+b2)
#               -> Sigmoid(. @ w3 + b3), one row-tile per grid step.
# ----------------------------------------------------------------------------
def _disc_mlp_kernel(z_ref, r_ref, w1_ref, b1_ref, w2_ref, b2_ref, w3_ref, b3_ref,
                     o_ref, x_ref):
    z_dim = z_ref.shape[-1]

    # Assemble the padded LHS tile [z | r | 0pad] directly in VMEM; the concat /
    # K-padding / cast never touch HBM.  Re-zero every step: under megacore
    # "parallel" splitting each core owns its own scratch, so a program_id==0-only
    # init would leave one core's padding lanes uninitialised.
    x_ref[...] = jnp.zeros_like(x_ref)
    x_ref[:, :z_dim] = z_ref[...]
    x_ref[:, z_dim:z_dim + 1] = r_ref[...]

    # Layer 1: (tm, K1p) @ (K1p, H).  Tiny contraction (K1p=16) -> keep f32 operands.
    h1 = jnp.dot(x_ref[...], w1_ref[...], preferred_element_type=jnp.float32)
    h1 = jnp.maximum(h1 + b1_ref[...], 0.0)

    # Layer 2: (tm, H) @ (H, H) -- bf16 MXU operands, f32 accumulation.
    h2 = jnp.dot(h1.astype(jnp.bfloat16), w2_ref[...],
                 preferred_element_type=jnp.float32)
    h2 = jnp.maximum(h2 + b2_ref[...], 0.0)

    # Layer 3 (H -> 1): VPU multiply + lane reduction; output stays exactly 1 lane wide
    # (no 1->128 padded store, no post-kernel slice).
    o = jnp.sum(h2 * w3_ref[...], axis=-1, keepdims=True)          # (tm, 1) f32
    o_ref[...] = jax.nn.sigmoid(o + b3_ref[...])


# ----------------------------------------------------------------------------
# Parameter prep: transpose / pad / cast once, outside the jitted forward.
# ----------------------------------------------------------------------------
def prepare_params(params):
    w1, b1 = params["w1"], params["b1"]   # (H, z_dim+1), (H,)
    w2, b2 = params["w2"], params["b2"]   # (H, H),       (H,)
    w3, b3 = params["w3"], params["b3"]   # (1, H),       (1,)

    H, in_f = w1.shape
    k1p = _round_up(in_f, 16)             # 11 -> 16 (was 128)

    w1p = jnp.zeros((k1p, H), jnp.float32).at[:in_f, :].set(w1.T.astype(jnp.float32))
    b1p = b1.reshape(1, H).astype(jnp.float32)
    w2p = w2.T.astype(jnp.bfloat16)
    b2p = b2.reshape(1, H).astype(jnp.float32)
    w3p = w3.reshape(1, H).astype(jnp.float32)
    b3p = b3.reshape(1, 1).astype(jnp.float32)
    return (w1p, b1p, w2p, b2p, w3p, b3p)


# ----------------------------------------------------------------------------
# Forward: out = net(cat([z[:B], r], 1)) -> (B, 1) f32.  Zero wrapper-side data ops.
# ----------------------------------------------------------------------------
def discriminator_forward(prepped, r, z):
    w1p, b1p, w2p, b2p, w3p, b3p = prepped
    k1p, H = w1p.shape
    B = r.shape[0]                        # only the first B rows of z are used
    z_dim = z.shape[1]

    # Row tile: multiple of 16 (bf16 sublane packing), capped at 256 (fills the 256-wide
    # MXU on v6e/v7x).  If the whole batch fits in a single tile but is big enough, split
    # it in two so a second TensorCore (v7x) gets work; extra cost elsewhere is ~0.35 us.
    mp = _round_up(B, 16)
    tm = min(mp, 256)
    if tm == mp and mp >= 64:
        tm = _round_up(mp // 2, 16)
    grid = (B + tm - 1) // tm             # ragged last block: OOB reads discarded, writes clamped

    cost = pl.CostEstimate(
        flops=2 * B * (k1p * H + H * H + H),
        transcendentals=B,                # one sigmoid per row
        bytes_accessed=(w1p.size + b1p.size + b2p.size + w3p.size + b3p.size) * 4
        + w2p.size * 2 + B * (z_dim + 2) * 4,
    )

    return pl.pallas_call(
        _disc_mlp_kernel,
        out_shape=jax.ShapeDtypeStruct((B, 1), jnp.float32),
        grid_spec=pltpu.PrefetchScalarGridSpec(
            num_scalar_prefetch=0,
            grid=(grid,),
            in_specs=[
                pl.BlockSpec((tm, z_dim), lambda i: (i, 0)),   # z row tile
                pl.BlockSpec((tm, 1),     lambda i: (i, 0)),   # r row tile
                pl.BlockSpec((k1p, H),    lambda i: (0, 0)),   # W1 (resident)
                pl.BlockSpec((1, H),      lambda i: (0, 0)),   # b1
                pl.BlockSpec((H, H),      lambda i: (0, 0)),   # W2 (resident)
                pl.BlockSpec((1, H),      lambda i: (0, 0)),   # b2
                pl.BlockSpec((1, H),      lambda i: (0, 0)),   # w3 row
                pl.BlockSpec((1, 1),      lambda i: (0, 0)),   # b3
            ],
            out_specs=pl.BlockSpec((tm, 1), lambda i: (i, 0)),
            scratch_shapes=[pltpu.VMEM((tm, k1p), jnp.float32)],
        ),
        compiler_params=pltpu.CompilerParams(dimension_semantics=("parallel",)),
        cost_estimate=cost,
    )(z, r, w1p, b1p, w2p, b2p, w3p, b3p)


# ----------------------------------------------------------------------------
# Deterministic kaiming-style init (matches kaiming_init: normal weights, zero bias)
# ----------------------------------------------------------------------------
def init_params(key, z_dim=10, hidden=512):
    k1, k2, k3 = jax.random.split(key, 3)

    def lin_w(k, out_f, in_f):
        return jax.random.normal(k, (out_f, in_f), jnp.float32) * jnp.sqrt(2.0 / in_f)

    return {
        "w1": lin_w(k1, hidden, z_dim + 1), "b1": jnp.zeros((hidden,), jnp.float32),
        "w2": lin_w(k2, hidden, hidden),    "b2": jnp.zeros((hidden,), jnp.float32),
        "w3": lin_w(k3, 1, hidden),         "b3": jnp.zeros((1,), jnp.float32),
    }


def reference_forward(params, r, z):
    x = jnp.concatenate([z[:r.shape[0]], r], axis=1)
    h = jnp.maximum(x @ params["w1"].T + params["b1"], 0.0)
    h = jnp.maximum(h @ params["w2"].T + params["b2"], 0.0)
    return jax.nn.sigmoid(h @ params["w3"].T + params["b3"])


if __name__ == "__main__":
    key = jax.random.PRNGKey(0)
    k_param, k_r, k_z = jax.random.split(key, 3)

    B, z_dim = 2, 10
    params = init_params(k_param, z_dim=z_dim)
    prepped = prepare_params(params)

    r = jax.random.normal(k_r, (B, 1), jnp.float32)
    z = jax.random.normal(k_z, (B, z_dim), jnp.float32)

    fwd = jax.jit(discriminator_forward)
    out = fwd(prepped, r, z)
    jax.block_until_ready(out)

    assert out.shape == (B, 1)
    assert bool(jnp.all(jnp.isfinite(out)))
    assert bool(jnp.all((out >= 0.0) & (out <= 1.0)))

    # Loose check against f32 reference (layer-2 uses bf16 MXU operands).
    ref = reference_forward(params, r, z)
    assert bool(jnp.all(jnp.abs(out - ref) < 5e-2))

    print("KERNEL_OK")
</pallas_src>

<mosaic_0001>
module attributes {stable_mosaic.version = 11 : i64} {
  func.func @_disc_mlp_kernel(%arg0: i32, %arg1: memref<16x10xf32, #tpu.memory_space<vmem>>, %arg2: memref<16x1xf32, #tpu.memory_space<vmem>>, %arg3: memref<16x512xf32, #tpu.memory_space<vmem>>, %arg4: memref<1x512xf32, #tpu.memory_space<vmem>>, %arg5: memref<512x512xbf16, #tpu.memory_space<vmem>>, %arg6: memref<1x512xf32, #tpu.memory_space<vmem>>, %arg7: memref<1x512xf32, #tpu.memory_space<vmem>>, %arg8: memref<1x1xf32, #tpu.memory_space<vmem>>, %arg9: memref<16x1xf32, #tpu.memory_space<vmem>>, %arg10: memref<16x16xf32, #tpu.memory_space<vmem>>) attributes {dimension_semantics = [#tpu.dimension_semantics<parallel>], iteration_bounds = array<i64: 1>, scalar_prefetch = 0 : i64, scratch_operands = 1 : i64, tpu.core_type = #tpu.core_type<tc>, window_params = [{transform_indices = @transform_0, window_bounds = array<i64: 16, 10>}, {transform_indices = @transform_1, window_bounds = array<i64: 16, 1>}, {pipeline_mode = #tpu.pipeline_mode<synchronous>, transform_indices = @transform_2, window_bounds = array<i64: 16, 512>}, {pipeline_mode = #tpu.pipeline_mode<synchronous>, transform_indices = @transform_3, window_bounds = array<i64: 1, 512>}, {pipeline_mode = #tpu.pipeline_mode<synchronous>, transform_indices = @transform_4, window_bounds = array<i64: 512, 512>}, {pipeline_mode = #tpu.pipeline_mode<synchronous>, transform_indices = @transform_5, window_bounds = array<i64: 1, 512>}, {pipeline_mode = #tpu.pipeline_mode<synchronous>, transform_indices = @transform_6, window_bounds = array<i64: 1, 512>}, {pipeline_mode = #tpu.pipeline_mode<synchronous>, transform_indices = @transform_7, window_bounds = array<i64: 1, 1>}, {transform_indices = @transform_8, window_bounds = array<i64: 16, 1>}]} {
    %cst = arith.constant 0.000000e+00 : f32
    %0 = vector.broadcast %cst : f32 to vector<16x16xf32>
    %c0 = arith.constant 0 : index
    %c0_0 = arith.constant 0 : index
    %1 = vector.load %arg10[%c0, %c0_0] : memref<16x16xf32, #tpu.memory_space<vmem>>, vector<16x16xf32>
    tpu.vector_store %arg10[%c0, %c0_0], %0 {strides = array<i32>} : memref<16x16xf32, #tpu.memory_space<vmem>>, vector<16x16xf32>,
    %c0_1 = arith.constant 0 : index
    %c0_2 = arith.constant 0 : index
    %2 = vector.load %arg1[%c0_1, %c0_2] : memref<16x10xf32, #tpu.memory_space<vmem>>, vector<16x10xf32>
    %c0_3 = arith.constant 0 : index
    %c0_4 = arith.constant 0 : index
    %3 = vector.load %arg10[%c0_3, %c0_4] : memref<16x16xf32, #tpu.memory_space<vmem>>, vector<16x10xf32>
    tpu.vector_store %arg10[%c0_3, %c0_4], %2 {strides = array<i32>} : memref<16x16xf32, #tpu.memory_space<vmem>>, vector<16x10xf32>,
    %c0_5 = arith.constant 0 : index
    %c0_6 = arith.constant 0 : index
    %4 = vector.load %arg2[%c0_5, %c0_6] : memref<16x1xf32, #tpu.memory_space<vmem>>, vector<16x1xf32>
    %c0_7 = arith.constant 0 : index
    %c10 = arith.constant 10 : index
    %5 = vector.load %arg10[%c0_7, %c10] : memref<16x16xf32, #tpu.memory_space<vmem>>, vector<16x1xf32>
    tpu.vector_store %arg10[%c0_7, %c10], %4 {strides = array<i32>} : memref<16x16xf32, #tpu.memory_space<vmem>>, vector<16x1xf32>,
    %c0_8 = arith.constant 0 : index
    %c0_9 = arith.constant 0 : index
    %6 = vector.load %arg10[%c0_8, %c0_9] : memref<16x16xf32, #tpu.memory_space<vmem>>, vector<16x16xf32>
    %c0_10 = arith.constant 0 : index
    %c0_11 = arith.constant 0 : index
    %7 = vector.load %arg3[%c0_10, %c0_11] : memref<16x512xf32, #tpu.memory_space<vmem>>, vector<16x512xf32>
    %cst_12 = arith.constant dense<0.000000e+00> : vector<16x512xf32>
    %8 = tpu.matmul %6, %7, %cst_12 {dimension_numbers = #tpu.dot_dimension_numbers<[1], [0], [0], [1], [0, 0, 1, 1], [], []>} : vector<16x16xf32>, vector<16x512xf32>, vector<16x512xf32> -> vector<16x512xf32>
    %c0_13 = arith.constant 0 : index
    %c0_14 = arith.constant 0 : index
    %9 = vector.load %arg4[%c0_13, %c0_14] : memref<1x512xf32, #tpu.memory_space<vmem>>, vector<1x512xf32>
    %10 = vector.broadcast %9 : vector<1x512xf32> to vector<16x512xf32>
    %11 = arith.addf %8, %10 : vector<16x512xf32>
    %cst_15 = arith.constant 0.000000e+00 : f32
    %12 = vector.broadcast %cst_15 : f32 to vector<16x512xf32>
    %13 = arith.maximumf %11, %12 : vector<16x512xf32>
    %14 = arith.truncf %13 : vector<16x512xf32> to vector<16x512xbf16>
    %c0_16 = arith.constant 0 : index
    %c0_17 = arith.constant 0 : index
    %15 = vector.load %arg5[%c0_16, %c0_17] : memref<512x512xbf16, #tpu.memory_space<vmem>>, vector<512x512xbf16>
    %cst_18 = arith.constant dense<0.000000e+00> : vector<16x512xf32>
    %16 = tpu.matmul %14, %15, %cst_18 {dimension_numbers = #tpu.dot_dimension_numbers<[1], [0], [0], [1], [0, 0, 1, 1], [], []>} : vector<16x512xbf16>, vector<512x512xbf16>, vector<16x512xf32> -> vector<16x512xf32>
    %c0_19 = arith.constant 0 : index
    %c0_20 = arith.constant 0 : index
    %17 = vector.load %arg6[%c0_19, %c0_20] : memref<1x512xf32, #tpu.memory_space<vmem>>, vector<1x512xf32>
    %18 = vector.broadcast %17 : vector<1x512xf32> to vector<16x512xf32>
    %19 = arith.addf %16, %18 : vector<16x512xf32>
    %cst_21 = arith.constant 0.000000e+00 : f32
    %20 = vector.broadcast %cst_21 : f32 to vector<16x512xf32>
    %21 = arith.maximumf %19, %20 : vector<16x512xf32>
    %c0_22 = arith.constant 0 : index
    %c0_23 = arith.constant 0 : index
    %22 = vector.load %arg7[%c0_22, %c0_23] : memref<1x512xf32, #tpu.memory_space<vmem>>, vector<1x512xf32>
    %23 = vector.broadcast %22 : vector<1x512xf32> to vector<16x512xf32>
    %24 = arith.mulf %21, %23 : vector<16x512xf32>
    %cst_24 = arith.constant dense<0.000000e+00> : vector<16xf32>
    %25 = vector.multi_reduction <add>, %24, %cst_24 [1] : vector<16x512xf32> to vector<16xf32>
    %26 = vector.shape_cast %25 : vector<16xf32> to vector<16x1xf32>
    %c0_25 = arith.constant 0 : index
    %c0_26 = arith.constant 0 : index
    %27 = vector.load %arg8[%c0_25, %c0_26] : memref<1x1xf32, #tpu.memory_space<vmem>>, vector<1x1xf32>
    %28 = vector.broadcast %27 : vector<1x1xf32> to vector<16x1xf32>
    %29 = arith.addf %26, %28 : vector<16x1xf32>
    %30 = arith.negf %29 : vector<16x1xf32>
    %31 = math.exp %30 : vector<16x1xf32>
    %cst_27 = arith.constant 1.000000e+00 : f32
    %32 = vector.broadcast %cst_27 : f32 to vector<16x1xf32>
    %33 = arith.addf %32, %31 : vector<16x1xf32>
    %34 = arith.divf %32, %33 : vector<16x1xf32>
    %c0_28 = arith.constant 0 : index
    %c0_29 = arith.constant 0 : index
    %35 = vector.load %arg9[%c0_28, %c0_29] : memref<16x1xf32, #tpu.memory_space<vmem>>, vector<16x1xf32>
    tpu.vector_store %arg9[%c0_28, %c0_29], %34 {strides = array<i32>} : memref<16x1xf32, #tpu.memory_space<vmem>>, vector<16x1xf32>,
    return
  }
  func.func @transform_0(%arg0: i32) -> (i32, i32) {
    %c0_i32 = arith.constant 0 : i32
    %c0_i32_0 = arith.constant 0 : i32
    return %arg0, %c0_i32 : i32, i32
  }
  func.func @transform_1(%arg0: i32) -> (i32, i32) {
    %c0_i32 = arith.constant 0 : i32
    %c0_i32_0 = arith.constant 0 : i32
    return %arg0, %c0_i32 : i32, i32
  }
  func.func @transform_2(%arg0: i32) -> (i32, i32) {
    %c0_i32 = arith.constant 0 : i32
    %c0_i32_0 = arith.constant 0 : i32
    %c0_i32_1 = arith.constant 0 : i32
    return %c0_i32, %c0_i32_0 : i32, i32
  }
  func.func @transform_3(%arg0: i32) -> (i32, i32) {
    %c0_i32 = arith.constant 0 : i32
    %c0_i32_0 = arith.constant 0 : i32
    %c0_i32_1 = arith.constant 0 : i32
    return %c0_i32, %c0_i32_0 : i32, i32
  }
  func.func @transform_4(%arg0: i32) -> (i32, i32) {
    %c0_i32 = arith.constant 0 : i32
    %c0_i32_0 = arith.constant 0 : i32
    %c0_i32_1 = arith.constant 0 : i32
    return %c0_i32, %c0_i32_0 : i32, i32
  }
  func.func @transform_5(%arg0: i32) -> (i32, i32) {
    %c0_i32 = arith.constant 0 : i32
    %c0_i32_0 = arith.constant 0 : i32
    %c0_i32_1 = arith.constant 0 : i32
    return %c0_i32, %c0_i32_0 : i32, i32
  }
  func.func @transform_6(%arg0: i32) -> (i32, i32) {
    %c0_i32 = arith.constant 0 : i32
    %c0_i32_0 = arith.constant 0 : i32
    %c0_i32_1 = arith.constant 0 : i32
    return %c0_i32, %c0_i32_0 : i32, i32
  }
  func.func @transform_7(%arg0: i32) -> (i32, i32) {
    %c0_i32 = arith.constant 0 : i32
    %c0_i32_0 = arith.constant 0 : i32
    %c0_i32_1 = arith.constant 0 : i32
    return %c0_i32, %c0_i32_0 : i32, i32
  }
  func.func @transform_8(%arg0: i32) -> (i32, i32) {
    %c0_i32 = arith.constant 0 : i32
    %c0_i32_0 = arith.constant 0 : i32
    return %arg0, %c0_i32 : i32, i32
  }
}

</mosaic_0001>

<llo_original>
// kernel: discriminator_forward.1
$region0: #{discriminator_forward.1}
  #allocation0 [shape = 'u32[]', space=smem, size = 0x4, offset = 0x4, fixed_abs, tag = 'smem constant byte address 0x4 - core index']
  #allocation1 [shape = 'u32[144,128]{1,0:T(1,128)}', space=vmem, size = 0x12000, scoped, tag = 'internal scratch']
  #allocation2 [shape = 'f32[16,16]{1,0:T(8,128)}', space=vmem, size = 0x2000, scoped, tag = 'scratch operand']
  #allocation3 [shape = 'f32[1,1]{1,0:T(1,128)S(1)}', space=vmem, size = 0x200, scoped, tag = 'scoped memory for discriminator_forward.1']
  %s0 = inlined_call_operand.vmem [shape: f32[2,10], index: 0, kind: input, shape index: {}]
  %s1 = inlined_call_operand.vmem [shape: f32[2,1], index: 1, kind: input, shape index: {}]
  %s2 = inlined_call_operand.hbm [shape: f32[16,512], index: 2, kind: input, shape index: {}]
  %s3 = inlined_call_operand.vmem [shape: f32[1,512], index: 3, kind: input, shape index: {}]
  %s4 = inlined_call_operand.hbm [shape: bf16[512,512], index: 4, kind: input, shape index: {}]
  %s5 = inlined_call_operand.vmem [shape: f32[1,512], index: 5, kind: input, shape index: {}]
  %s6 = inlined_call_operand.vmem [shape: f32[1,512], index: 6, kind: input, shape index: {}]
  %s7 = inlined_call_operand.<no memory space> [shape: f32[1,1], index: 7, kind: input, shape index: {}]
  %s8 = inlined_call_operand.vmem [shape: f32[2,1], index: 8, kind: output, shape index: {}]
  %s9 = sld [smem:[#allocation0]]
  $region80: #{discriminator_forward.1} parent=0
    _
  %s11 = ssub.s32 1, %s9
  %s12 = scalar_select 0, %s11, %s9
  %v13 = vstv %s7
  %14 = vst [vmem:[#allocation3] sm:$0x1] %v13
  $region1: #{discriminator_forward.1} parent=0
    #allocation4 [shape = 'u8[32768]{0}', space=vmem, size = 0x8000, scoped, tag = 'input window, operand 2, single buffered']
    #allocation5 [shape = 's32[1]{0}', space=sflag, size = 0x4, scoped, tag = 'scoped memory for discriminator_forward.1']
    #allocation6 [shape = 'u8[524288]{0}', space=vmem, size = 0x80000, scoped, tag = 'input window, operand 4, single buffered']
    #allocation7 [shape = 's32[1]{0}', space=sflag, size = 0x4, scoped, tag = 'scoped memory for discriminator_forward.1']
    #allocation8 [shape = 'u8[8192]{0}', space=vmem, size = 0x2000, scoped, tag = 'output window, operand 0, single buffered']
    %15 = vsyncpa [#allocation5], 0
    %16 = vsyncpa [#allocation7], 0
    // Predicated region
    $region2: #{discriminator_forward.1} parent=1 // pred_check
      _
    $region3: #{discriminator_forward.1} parent=1 // pred_check_branch
      %18 = sbr.rel (0) target = $region5
    $region4: #{discriminator_forward.1} parent=1 // pred_region
      _
    $region5: #{discriminator_forward.1} parent=1 // pred_fallthru
      _
    // Predicated region
    $region6: #{discriminator_forward.1} parent=1 // pred_check
      _
    $region7: #{discriminator_forward.1} parent=1 // pred_check_branch
      %20 = sbr.rel (0) target = $region9
    $region8: #{discriminator_forward.1} parent=1 // pred_region
      _
    $region9: #{discriminator_forward.1} parent=1 // pred_fallthru
      _
    // Predicated region
    $region10: #{discriminator_forward.1} parent=1 // pred_check
      _
    $region11: #{discriminator_forward.1} parent=1 // pred_check_branch
      %22 = sbr.rel (0) target = $region13
    $region12: #{discriminator_forward.1} parent=1 // pred_region
      %s24 = ssub.s32 1024, 1024
      %25 = vsyncadd [#allocation5], %s24
      %s26 = sshll.u32 [#allocation4], 4
      %s27 = int_to_ptr.vmem [resolvable:$true] %s26
      %32 = dma.hbm_to_vmem [thread:$0]  %s2, 1024, %s27, [#allocation5], 512, 512, 32
    $region13: #{discriminator_forward.1} parent=1 // pred_fallthru
      _
    // Predicated region
    $region14: #{discriminator_forward.1} parent=1 // pred_check
      _
    $region15: #{discriminator_forward.1} parent=1 // pred_check_branch
      %34 = sbr.rel (0) target = $region17
    $region16: #{discriminator_forward.1} parent=1 // pred_region
      _
    $region17: #{discriminator_forward.1} parent=1 // pred_fallthru
      _
    // Predicated region
    $region18: #{discriminator_forward.1} parent=1 // pred_check
      _
    $region19: #{discriminator_forward.1} parent=1 // pred_check_branch
      %36 = sbr.rel (0) target = $region21
    $region20: #{discriminator_forward.1} parent=1 // pred_region
      %s38 = ssub.s32 16384, 16384
      %39 = vsyncadd [#allocation7], %s38
      %s40 = sshll.u32 [#allocation6], 4
      %s41 = int_to_ptr.vmem [resolvable:$true] %s40
      %46 = dma.hbm_to_vmem [thread:$0]  %s4, 16384, %s41, [#allocation7], 256, 256, 16
    $region21: #{discriminator_forward.1} parent=1 // pred_fallthru
      _
    // Predicated region
    $region22: #{discriminator_forward.1} parent=1 // pred_check
      _
    $region23: #{discriminator_forward.1} parent=1 // pred_check_branch
      %48 = sbr.rel (0) target = $region25
    $region24: #{discriminator_forward.1} parent=1 // pred_region
      _
    $region25: #{discriminator_forward.1} parent=1 // pred_fallthru
      _
    // Predicated region
    $region26: #{discriminator_forward.1} parent=1 // pred_check
      _
    $region27: #{discriminator_forward.1} parent=1 // pred_check_branch
      %50 = sbr.rel (0) target = $region29
    $region28: #{discriminator_forward.1} parent=1 // pred_region
      _
    $region29: #{discriminator_forward.1} parent=1 // pred_fallthru
      _
    // Predicated region
    $region30: #{discriminator_forward.1} parent=1 // pred_check
      _
    $region31: #{discriminator_forward.1} parent=1 // pred_check_branch
      %52 = sbr.rel (0) target = $region33
    $region32: #{discriminator_forward.1} parent=1 // pred_region
      _
    $region33: #{discriminator_forward.1} parent=1 // pred_fallthru
      _
    // Predicated region
    $region34: #{discriminator_forward.1} parent=1 // pred_check
      _
    $region35: #{discriminator_forward.1} parent=1 // pred_check_branch
      %54 = sbr.rel (0) target = $region37
    $region36: #{discriminator_forward.1} parent=1 // pred_region
      %55 = dma.done [#allocation5], 1024
    $region37: #{discriminator_forward.1} parent=1 // pred_fallthru
      _
    // Predicated region
    $region38: #{discriminator_forward.1} parent=1 // pred_check
      _
    $region39: #{discriminator_forward.1} parent=1 // pred_check_branch
      %57 = sbr.rel (0) target = $region41
    $region40: #{discriminator_forward.1} parent=1 // pred_region
      %58 = dma.done [#allocation7], 16384
    $region41: #{discriminator_forward.1} parent=1 // pred_fallthru
      _
    %vm59 = vcmask 130048
    %60 = vst.msk [vmem:[#allocation2] sm:$0xff] %vm59, 0.0
    %61 = vst.msk [vmem:[#allocation2 + $0x8] sm:$0xff] %vm59, 0.0
    %v62 = vld [vmem:[%s0] sm:$0xff]
    %v63 = vld [vmem:[%s0 + $0x8] sm:$0xff]
    %vm64 = vcmask 80896
    %65 = vst.msk [vmem:[#allocation2] sm:$0xff] %vm64, %v62
    %66 = vst.msk [vmem:[#allocation2 + $0x8] sm:$0xff] %vm64, %v63
    %v67 = vld [vmem:[%s1] sm:$0xff]
    %v68 = vld [vmem:[%s1 + $0x8] sm:$0xff]
    %71 = vrot.lane.b32.xlu0 %v67, 10
    %v72 = vpop.permute.xlu0 %71
    %73 = vrot.lane.b32.xlu0 %v68, 10
    %v74 = vpop.permute.xlu0 %73
    %vm77 = vcmask 89168
    %78 = vst.msk [vmem:[#allocation2] sm:$0xff] %vm77, %v72
    %79 = vst.msk [vmem:[#allocation2 + $0x8] sm:$0xff] %vm77, %v74
    %v80 = vld [vmem:[#allocation2] sm:$0xff]
    %v81 = vld [vmem:[#allocation2 + $0x8] sm:$0xff]
    %v82 = vld [vmem:[#allocation4] sm:$0xff]
    %v83 = vld [vmem:[#allocation4 + $0x8] sm:$0xff]
    %v84 = vld [vmem:[#allocation4 + $0x10] sm:$0xff]
    %v85 = vld [vmem:[#allocation4 + $0x18] sm:$0xff]
    %v86 = vld [vmem:[#allocation4 + $0x20] sm:$0xff]
    %v87 = vld [vmem:[#allocation4 + $0x28] sm:$0xff]
    %v88 = vld [vmem:[#allocation4 + $0x30] sm:$0xff]
    %v89 = vld [vmem:[#allocation4 + $0x38] sm:$0xff]
    %v90 = vld [vmem:[%s3] sm:$0xf]
    %v92 = vlaneseq
    %v93 = vshrl.u32 %v92, 7
    %v94 = vsub.s32 0, %v93
    %v95 = vrot.slane %v90, %v94
    %v96 = vlaneseq
    %v97 = vshrl.u32 %v96, 7
    %v98 = vsub.s32 1, %v97
    %v99 = vrot.slane %v90, %v98
    %v100 = vlaneseq
    %v101 = vshrl.u32 %v100, 7
    %v102 = vsub.s32 2, %v101
    %v103 = vrot.slane %v90, %v102
    %v104 = vlaneseq
    %v105 = vshrl.u32 %v104, 7
    %v106 = vsub.s32 3, %v105
    %v107 = vrot.slane %v90, %v106
    %v113 = vsel %vm59, %v80, 0
    %v116 = vsel %vm59, %v81, 0
    %118 = vmatprep.subr.mxu0 %v83
    %119 = vmatpush1.msra.mxu0 %v82
    %120 = vmatprep.subr.mxu0 %v87
    %121 = vmatpush1.msra.mxu0 %v86
    %122 = vmatprep.subr.mxu0 0.0
    %123 = vmatpush1.msra.mxu0 0.0
    %124 = vmatprep.subr.mxu0 0.0
    %125 = vmatpush1.msra.mxu0 0.0
    %126 = vmatprep.subr.mxu0 0.0
    %127 = vmatpush1.msra.mxu0 0.0
    %128 = vmatprep.subr.mxu0 0.0
    %129 = vmatpush1.msra.mxu0 0.0
    %130 = vmatprep.subr.mxu0 0.0
    %131 = vmatpush1.msra.mxu0 0.0
    %132 = vmatprep.subr.mxu0 0.0
    %133 = vmatpush1.msra.mxu0 0.0
    %134 = vmatprep.subr.mxu0 0.0
    %135 = vmatpush1.msra.mxu0 0.0
    %136 = vmatprep.subr.mxu0 0.0
    %137 = vmatpush1.msra.mxu0 0.0
    %138 = vmatprep.subr.mxu0 0.0
    %139 = vmatpush1.msra.mxu0 0.0
    %140 = vmatprep.subr.mxu0 0.0
    %141 = vmatpush1.msra.mxu0 0.0
    %142 = vmatprep.subr.mxu0 0.0
    %143 = vmatpush1.msra.mxu0 0.0
    %144 = vmatprep.subr.mxu0 0.0
    %145 = vmatpush1.msra.mxu0 0.0
    %146 = vmatprep.subr.mxu0 0.0
    %147 = vmatpush1.msra.mxu0 0.0
    %148 = vmatprep.subr.mxu0 0.0
    %149 = vmatpush1.msra.mxu0 0.0
    %150 = vmatprep.subr.mxu0 0.0
    %151 = vmatpush1.msra.mxu0 0.0
    %152 = vmatprep.subr.mxu0 0.0
    %153 = vmatpush1.msra.mxu0 0.0
    %154 = vmatprep.subr.mxu0 0.0
    %155 = vmatpush1.msra.mxu0 0.0
    %156 = vmatprep.subr.mxu0 0.0
    %157 = vmatpush1.msra.mxu0 0.0
    %158 = vmatprep.subr.mxu0 0.0
    %159 = vmatpush1.msra.mxu0 0.0
    %160 = vmatprep.subr.mxu0 0.0
    %161 = vmatpush1.msra.mxu0 0.0
    %162 = vmatprep.subr.mxu0 0.0
    %163 = vmatpush1.msra.mxu0 0.0
    %164 = vmatprep.subr.mxu0 0.0
    %165 = vmatpush1.msra.mxu0 0.0
    %166 = vmatprep.subr.mxu0 0.0
    %167 = vmatpush1.msra.mxu0 0.0
    %168 = vmatprep.subr.mxu0 0.0
    %169 = vmatpush1.msra.mxu0 0.0
    %170 = vmatprep.subr.mxu0 0.0
    %171 = vmatpush1.msra.mxu0 0.0
    %172 = vmatprep.subr.mxu0 0.0
    %173 = vmatpush1.msra.mxu0 0.0
    %174 = vmatprep.subr.mxu0 0.0
    %175 = vmatpush1.msra.mxu0 0.0
    %176 = vmatprep.subr.mxu0 0.0
    %177 = vmatpush1.msra.mxu0 0.0
    %178 = vmatprep.subr.mxu0 0.0
    %179 = vmatpush1.msra.mxu0 0.0
    %180 = vmatprep.subr.mxu0 0.0
    %181 = vmatpush1.msra.mxu0 0.0
    %182 = vmatprep.mubr.f32.mxu0 0.0
    %183 = vmatmul.mubr.f32.gmra.mrb[0].mxu0 %v113
    %v184 = vpop.f32.mrb[0].mxu0
    %v185 = vadd.f32 %v95, %v184
    %v186 = vpop.f32.mrb[0].mxu0
    %v187 = vadd.f32 %v99, %v186
    %188 = vmatprep.mubr.f32.mxu0 0.0
    %189 = vmatmul.mubr.f32.gmra.mrb[0].mxu0 %v116
    %v190 = vpop.f32.mrb[0].mxu0
    %v191 = vadd.f32 %v95, %v190
    %v192 = vpop.f32.mrb[0].mxu0
    %v193 = vadd.f32 %v99, %v192
    %194 = vdwg.mxu0
    %195 = vmatprep.subr.mxu0 %v85
    %196 = vmatpush1.msra.mxu0 %v84
    %197 = vmatprep.subr.mxu0 %v89
    %198 = vmatpush1.msra.mxu0 %v88
    %199 = vmatprep.subr.mxu0 0.0
    %200 = vmatpush1.msra.mxu0 0.0
    %201 = vmatprep.subr.mxu0 0.0
    %202 = vmatpush1.msra.mxu0 0.0
    %203 = vmatprep.subr.mxu0 0.0
    %204 = vmatpush1.msra.mxu0 0.0
    %205 = vmatprep.subr.mxu0 0.0
    %206 = vmatpush1.msra.mxu0 0.0
    %207 = vmatprep.subr.mxu0 0.0
    %208 = vmatpush1.msra.mxu0 0.0
    %209 = vmatprep.subr.mxu0 0.0
    %210 = vmatpush1.msra.mxu0 0.0
    %211 = vmatprep.subr.mxu0 0.0
    %212 = vmatpush1.msra.mxu0 0.0
    %213 = vmatprep.subr.mxu0 0.0
    %214 = vmatpush1.msra.mxu0 0.0
    %215 = vmatprep.subr.mxu0 0.0
    %216 = vmatpush1.msra.mxu0 0.0
    %217 = vmatprep.subr.mxu0 0.0
    %218 = vmatpush1.msra.mxu0 0.0
    %219 = vmatprep.subr.mxu0 0.0
    %220 = vmatpush1.msra.mxu0 0.0
    %221 = vmatprep.subr.mxu0 0.0
    %222 = vmatpush1.msra.mxu0 0.0
    %223 = vmatprep.subr.mxu0 0.0
    %224 = vmatpush1.msra.mxu0 0.0
    %225 = vmatprep.subr.mxu0 0.0
    %226 = vmatpush1.msra.mxu0 0.0
    %227 = vmatprep.subr.mxu0 0.0
    %228 = vmatpush1.msra.mxu0 0.0
    %229 = vmatprep.subr.mxu0 0.0
    %230 = vmatpush1.msra.mxu0 0.0
    %231 = vmatprep.subr.mxu0 0.0
    %232 = vmatpush1.msra.mxu0 0.0
    %233 = vmatprep.subr.mxu0 0.0
    %234 = vmatpush1.msra.mxu0 0.0
    %235 = vmatprep.subr.mxu0 0.0
    %236 = vmatpush1.msra.mxu0 0.0
    %237 = vmatprep.subr.mxu0 0.0
    %238 = vmatpush1.msra.mxu0 0.0
    %239 = vmatprep.subr.mxu0 0.0
    %240 = vmatpush1.msra.mxu0 0.0
    %241 = vmatprep.subr.mxu0 0.0
    %242 = vmatpush1.msra.mxu0 0.0
    %243 = vmatprep.subr.mxu0 0.0
    %244 = vmatpush1.msra.mxu0 0.0
    %245 = vmatprep.subr.mxu0 0.0
    %246 = vmatpush1.msra.mxu0 0.0
    %247 = vmatprep.subr.mxu0 0.0
    %248 = vmatpush1.msra.mxu0 0.0
    %249 = vmatprep.subr.mxu0 0.0
    %250 = vmatpush1.msra.mxu0 0.0
    %251 = vmatprep.subr.mxu0 0.0
    %252 = vmatpush1.msra.mxu0 0.0
    %253 = vmatprep.subr.mxu0 0.0
    %254 = vmatpush1.msra.mxu0 0.0
    %255 = vmatprep.subr.mxu0 0.0
    %256 = vmatpush1.msra.mxu0 0.0
    %257 = vmatprep.subr.mxu0 0.0
    %258 = vmatpush1.msra.mxu0 0.0
    %259 = vmatprep.mubr.f32.mxu0 0.0
    %260 = vmatmul.mubr.f32.gmra.mrb[0].mxu0 %v113
    %v261 = vpop.f32.mrb[0].mxu0
    %v262 = vadd.f32 %v103, %v261
    %v263 = vpop.f32.mrb[0].mxu0
    %v264 = vadd.f32 %v107, %v263
    %265 = vmatprep.mubr.f32.mxu0 0.0
    %266 = vmatmul.mubr.f32.gmra.mrb[0].mxu0 %v116
    %v267 = vpop.f32.mrb[0].mxu0
    %v268 = vadd.f32 %v103, %v267
    %v269 = vpop.f32.mrb[0].mxu0
    %v270 = vadd.f32 %v107, %v269
    %271 = vdwg.mxu0
    %v272 = vmax.f32 %v185, 0.0
    %v273 = vmax.f32 %v187, 0.0
    %v274 = vmax.f32 %v262, 0.0
    %v275 = vmax.f32 %v264, 0.0
    %v276 = vmax.f32 %v191, 0.0
    %v277 = vmax.f32 %v193, 0.0
    %v278 = vmax.f32 %v268, 0.0
    %v279 = vmax.f32 %v270, 0.0
    %v280 = vpack.c.bf16 %v276, %v272
    %v281 = vpack.c.bf16 %v277, %v273
    %v282 = vpack.c.bf16 %v278, %v274
    %v283 = vpack.c.bf16 %v279, %v275
    %v284 = vld [vmem:[#allocation6] sm:$0xff]
    %v285 = vld [vmem:[#allocation6 + $0x8] sm:$0xff]
    %v286 = vld [vmem:[#allocation6 + $0x10] sm:$0xff]
    %v287 = vld [vmem:[#allocation6 + $0x18] sm:$0xff]
    %v288 = vld [vmem:[#allocation6 + $0x20] sm:$0xff]
    %v289 = vld [vmem:[#allocation6 + $0x28] sm:$0xff]
    %v290 = vld [vmem:[#allocation6 + $0x30] sm:$0xff]
    %v291 = vld [vmem:[#allocation6 + $0x38] sm:$0xff]
    %v292 = vld [vmem:[#allocation6 + $0x40] sm:$0xff]
    %v293 = vld [vmem:[#allocation6 + $0x48] sm:$0xff]
    %v294 = vld [vmem:[#allocation6 + $0x50] sm:$0xff]
    %v295 = vld [vmem:[#allocation6 + $0x58] sm:$0xff]
    %v296 = vld [vmem:[#allocation6 + $0x60] sm:$0xff]
    %v297 = vld [vmem:[#allocation6 + $0x68] sm:$0xff]
    %v298 = vld [vmem:[#allocation6 + $0x70] sm:$0xff]
    %v299 = vld [vmem:[#allocation6 + $0x78] sm:$0xff]
    %v300 = vld [vmem:[#allocation6 + $0x80] sm:$0xff]
    %v301 = vld [vmem:[#allocation6 + $0x88] sm:$0xff]
    %v302 = vld [vmem:[#allocation6 + $0x90] sm:$0xff]
    %v303 = vld [vmem:[#allocation6 + $0x98] sm:$0xff]
    %v304 = vld [vmem:[#allocation6 + $0xa0] sm:$0xff]
    %v305 = vld [vmem:[#allocation6 + $0xa8] sm:$0xff]
    %v306 = vld [vmem:[#allocation6 + $0xb0] sm:$0xff]
    %v307 = vld [vmem:[#allocation6 + $0xb8] sm:$0xff]
    %v308 = vld [vmem:[#allocation6 + $0xc0] sm:$0xff]
    %v309 = vld [vmem:[#allocation6 + $0xc8] sm:$0xff]
    %v310 = vld [vmem:[#allocation6 + $0xd0] sm:$0xff]
    %v311 = vld [vmem:[#allocation6 + $0xd8] sm:$0xff]
    %v312 = vld [vmem:[#allocation6 + $0xe0] sm:$0xff]
    %v313 = vld [vmem:[#allocation6 + $0xe8] sm:$0xff]
    %v314 = vld [vmem:[#allocation6 + $0xf0] sm:$0xff]
    %v315 = vld [vmem:[#allocation6 + $0xf8] sm:$0xff]
    %v316 = vld [vmem:[#allocation6 + $0x100] sm:$0xff]
    %v317 = vld [vmem:[#allocation6 + $0x108] sm:$0xff]
    %v318 = vld [vmem:[#allocation6 + $0x110] sm:$0xff]
    %v319 = vld [vmem:[#allocation6 + $0x118] sm:$0xff]
    %v320 = vld [vmem:[#allocation6 + $0x120] sm:$0xff]
    %v321 = vld [vmem:[#allocation6 + $0x128] sm:$0xff]
    %v322 = vld [vmem:[#allocation6 + $0x130] sm:$0xff]
    %v323 = vld [vmem:[#allocation6 + $0x138] sm:$0xff]
    %v324 = vld [vmem:[#allocation6 + $0x140] sm:$0xff]
    %v325 = vld [vmem:[#allocation6 + $0x148] sm:$0xff]
    %v326 = vld [vmem:[#allocation6 + $0x150] sm:$0xff]
    %v327 = vld [vmem:[#allocation6 + $0x158] sm:$0xff]
    %v328 = vld [vmem:[#allocation6 + $0x160] sm:$0xff]
    %v329 = vld [vmem:[#allocation6 + $0x168] sm:$0xff]
    %v330 = vld [vmem:[#allocation6 + $0x170] sm:$0xff]
    %v331 = vld [vmem:[#allocation6 + $0x178] sm:$0xff]
    %v332 = vld [vmem:[#allocation6 + $0x180] sm:$0xff]
    %v333 = vld [vmem:[#allocation6 + $0x188] sm:$0xff]
    %v334 = vld [vmem:[#allocation6 + $0x190] sm:$0xff]
    %v335 = vld [vmem:[#allocation6 + $0x198] sm:$0xff]
    %v336 = vld [vmem:[#allocation6 + $0x1a0] sm:$0xff]
    %v337 = vld [vmem:[#allocation6 + $0x1a8] sm:$0xff]
    %v338 = vld [vmem:[#allocation6 + $0x1b0] sm:$0xff]
    %v339 = vld [vmem:[#allocation6 + $0x1b8] sm:$0xff]
    %v340 = vld [vmem:[#allocation6 + $0x1c0] sm:$0xff]
    %v341 = vld [vmem:[#allocation6 + $0x1c8] sm:$0xff]
    %v342 = vld [vmem:[#allocation6 + $0x1d0] sm:$0xff]
    %v343 = vld [vmem:[#allocation6 + $0x1d8] sm:$0xff]
    %v344 = vld [vmem:[#allocation6 + $0x1e0] sm:$0xff]
    %v345 = vld [vmem:[#allocation6 + $0x1e8] sm:$0xff]
    %v346 = vld [vmem:[#allocation6 + $0x1f0] sm:$0xff]
    %v347 = vld [vmem:[#allocation6 + $0x1f8] sm:$0xff]
    %v348 = vld [vmem:[#allocation6 + $0x200] sm:$0xff]
    %v349 = vld [vmem:[#allocation6 + $0x208] sm:$0xff]
    %v350 = vld [vmem:[#allocation6 + $0x210] sm:$0xff]
    %v351 = vld [vmem:[#allocation6 + $0x218] sm:$0xff]
    %v352 = vld [vmem:[#allocation6 + $0x220] sm:$0xff]
    %v353 = vld [vmem:[#allocation6 + $0x228] sm:$0xff]
    %v354 = vld [vmem:[#allocation6 + $0x230] sm:$0xff]
    %v355 = vld [vmem:[#allocation6 + $0x238] sm:$0xff]
    %v356 = vld [vmem:[#allocation6 + $0x240] sm:$0xff]
    %v357 = vld [vmem:[#allocation6 + $0x248] sm:$0xff]
    %v358 = vld [vmem:[#allocation6 + $0x250] sm:$0xff]
    %v359 = vld [vmem:[#allocation6 + $0x258] sm:$0xff]
    %v360 = vld [vmem:[#allocation6 + $0x260] sm:$0xff]
    %v361 = vld [vmem:[#allocation6 + $0x268] sm:$0xff]
    %v362 = vld [vmem:[#allocation6 + $0x270] sm:$0xff]
    %v363 = vld [vmem:[#allocation6 + $0x278] sm:$0xff]
    %v364 = vld [vmem:[#allocation6 + $0x280] sm:$0xff]
    %v365 = vld [vmem:[#allocation6 + $0x288] sm:$0xff]
    %v366 = vld [vmem:[#allocation6 + $0x290] sm:$0xff]
    %v367 = vld [vmem:[#allocation6 + $0x298] sm:$0xff]
    %v368 = vld [vmem:[#allocation6 + $0x2a0] sm:$0xff]
    %v369 = vld [vmem:[#allocation6 + $0x2a8] sm:$0xff]
    %v370 = vld [vmem:[#allocation6 + $0x2b0] sm:$0xff]
    %v371 = vld [vmem:[#allocation6 + $0x2b8] sm:$0xff]
    %v372 = vld [vmem:[#allocation6 + $0x2c0] sm:$0xff]
    %v373 = vld [vmem:[#allocation6 + $0x2c8] sm:$0xff]
    %v374 = vld [vmem:[#allocation6 + $0x2d0] sm:$0xff]
    %v375 = vld [vmem:[#allocation6 + $0x2d8] sm:$0xff]
    %v376 = vld [vmem:[#allocation6 + $0x2e0] sm:$0xff]
    %v377 = vld [vmem:[#allocation6 + $0x2e8] sm:$0xff]
    %v378 = vld [vmem:[#allocation6 + $0x2f0] sm:$0xff]
    %v379 = vld [vmem:[#allocation6 + $0x2f8] sm:$0xff]
    %v380 = vld [vmem:[#allocation6 + $0x300] sm:$0xff]
    %v381 = vld [vmem:[#allocation6 + $0x308] sm:$0xff]
    %v382 = vld [vmem:[#allocation6 + $0x310] sm:$0xff]
    %v383 = vld [vmem:[#allocation6 + $0x318] sm:$0xff]
    %v384 = vld [vmem:[#allocation6 + $0x320] sm:$0xff]
    %v385 = vld [vmem:[#allocation6 + $0x328] sm:$0xff]
    %v386 = vld [vmem:[#allocation6 + $0x330] sm:$0xff]
    %v387 = vld [vmem:[#allocation6 + $0x338] sm:$0xff]
    %v388 = vld [vmem:[#allocation6 + $0x340] sm:$0xff]
    %v389 = vld [vmem:[#allocation6 + $0x348] sm:$0xff]
    %v390 = vld [vmem:[#allocation6 + $0x350] sm:$0xff]
    %v391 = vld [vmem:[#allocation6 + $0x358] sm:$0xff]
    %v392 = vld [vmem:[#allocation6 + $0x360] sm:$0xff]
    %v393 = vld [vmem:[#allocation6 + $0x368] sm:$0xff]
    %v394 = vld [vmem:[#allocation6 + $0x370] sm:$0xff]
    %v395 = vld [vmem:[#allocation6 + $0x378] sm:$0xff]
    %v396 = vld [vmem:[#allocation6 + $0x380] sm:$0xff]
    %v397 = vld [vmem:[#allocation6 + $0x388] sm:$0xff]
    %v398 = vld [vmem:[#allocation6 + $0x390] sm:$0xff]
    %v399 = vld [vmem:[#allocation6 + $0x398] sm:$0xff]
    %v400 = vld [vmem:[#allocation6 + $0x3a0] sm:$0xff]
    %v401 = vld [vmem:[#allocation6 + $0x3a8] sm:$0xff]
    %v402 = vld [vmem:[#allocation6 + $0x3b0] sm:$0xff]
    %v403 = vld [vmem:[#allocation6 + $0x3b8] sm:$0xff]
    %v404 = vld [vmem:[#allocation6 + $0x3c0] sm:$0xff]
    %v405 = vld [vmem:[#allocation6 + $0x3c8] sm:$0xff]
    %v406 = vld [vmem:[#allocation6 + $0x3d0] sm:$0xff]
    %v407 = vld [vmem:[#allocation6 + $0x3d8] sm:$0xff]
    %v408 = vld [vmem:[#allocation6 + $0x3e0] sm:$0xff]
    %v409 = vld [vmem:[#allocation6 + $0x3e8] sm:$0xff]
    %v410 = vld [vmem:[#allocation6 + $0x3f0] sm:$0xff]
    %v411 = vld [vmem:[#allocation6 + $0x3f8] sm:$0xff]
    %v412 = vld [vmem:[%s5] sm:$0xf]
    %v414 = vlaneseq
    %v415 = vshrl.u32 %v414, 7
    %v416 = vsub.s32 0, %v415
    %v417 = vrot.slane %v412, %v416
    %v418 = vlaneseq
    %v419 = vshrl.u32 %v418, 7
    %v420 = vsub.s32 1, %v419
    %v421 = vrot.slane %v412, %v420
    %v422 = vlaneseq
    %v423 = vshrl.u32 %v422, 7
    %v424 = vsub.s32 2, %v423
    %v425 = vrot.slane %v412, %v424
    %v426 = vlaneseq
    %v427 = vshrl.u32 %v426, 7
    %v428 = vsub.s32 3, %v427
    %v429 = vrot.slane %v412, %v428
    %v562 = vunpack.c.l.b16 %v284
    %v563 = vunpack.c.h.b16 %v284
    %v564 = vunpack.c.l.b16 %v285
    %v565 = vunpack.c.h.b16 %v285
    %v566 = vunpack.c.l.b16 %v286
    %v567 = vunpack.c.h.b16 %v286
    %v568 = vunpack.c.l.b16 %v287
    %v569 = vunpack.c.h.b16 %v287
    %v570 = vunpack.c.l.b16 %v288
    %v571 = vunpack.c.h.b16 %v288
    %v572 = vunpack.c.l.b16 %v289
    %v573 = vunpack.c.h.b16 %v289
    %v574 = vunpack.c.l.b16 %v290
    %v575 = vunpack.c.h.b16 %v290
    %v576 = vunpack.c.l.b16 %v291
    %v577 = vunpack.c.h.b16 %v291
    %v578 = vunpack.c.l.b16 %v292
    %v579 = vunpack.c.h.b16 %v292
    %v580 = vunpack.c.l.b16 %v293
    %v581 = vunpack.c.h.b16 %v293
    %v582 = vunpack.c.l.b16 %v294
    %v583 = vunpack.c.h.b16 %v294
    %v584 = vunpack.c.l.b16 %v295
    %v585 = vunpack.c.h.b16 %v295
    %v586 = vunpack.c.l.b16 %v296
    %v587 = vunpack.c.h.b16 %v296
    %v588 = vunpack.c.l.b16 %v297
    %v589 = vunpack.c.h.b16 %v297
    %v590 = vunpack.c.l.b16 %v298
    %v591 = vunpack.c.h.b16 %v298
    %v592 = vunpack.c.l.b16 %v299
    %v593 = vunpack.c.h.b16 %v299
    %v594 = vunpack.c.l.b16 %v300
    %v595 = vunpack.c.h.b16 %v300
    %v596 = vunpack.c.l.b16 %v301
    %v597 = vunpack.c.h.b16 %v301
    %v598 = vunpack.c.l.b16 %v302
    %v599 = vunpack.c.h.b16 %v302
    %v600 = vunpack.c.l.b16 %v303
    %v601 = vunpack.c.h.b16 %v303
    %v602 = vunpack.c.l.b16 %v304
    %v603 = vunpack.c.h.b16 %v304
    %v604 = vunpack.c.l.b16 %v305
    %v605 = vunpack.c.h.b16 %v305
    %v606 = vunpack.c.l.b16 %v306
    %v607 = vunpack.c.h.b16 %v306
    %v608 = vunpack.c.l.b16 %v307
    %v609 = vunpack.c.h.b16 %v307
    %v610 = vunpack.c.l.b16 %v308
    %v611 = vunpack.c.h.b16 %v308
    %v612 = vunpack.c.l.b16 %v309
    %v613 = vunpack.c.h.b16 %v309
    %v614 = vunpack.c.l.b16 %v310
    %v615 = vunpack.c.h.b16 %v310
    %v616 = vunpack.c.l.b16 %v311
    %v617 = vunpack.c.h.b16 %v311
    %v618 = vunpack.c.l.b16 %v312
    %v619 = vunpack.c.h.b16 %v312
    %v620 = vunpack.c.l.b16 %v313
    %v621 = vunpack.c.h.b16 %v313
    %v622 = vunpack.c.l.b16 %v314
    %v623 = vunpack.c.h.b16 %v314
    %v624 = vunpack.c.l.b16 %v315
    %v625 = vunpack.c.h.b16 %v315
    %v626 = vunpack.c.l.b16 %v316
    %v627 = vunpack.c.h.b16 %v316
    %v628 = vunpack.c.l.b16 %v317
    %v629 = vunpack.c.h.b16 %v317
    %v630 = vunpack.c.l.b16 %v318
    %v631 = vunpack.c.h.b16 %v318
    %v632 = vunpack.c.l.b16 %v319
    %v633 = vunpack.c.h.b16 %v319
    %v634 = vunpack.c.l.b16 %v320
    %v635 = vunpack.c.h.b16 %v320
    %v636 = vunpack.c.l.b16 %v321
    %v637 = vunpack.c.h.b16 %v321
    %v638 = vunpack.c.l.b16 %v322
    %v639 = vunpack.c.h.b16 %v322
    %v640 = vunpack.c.l.b16 %v323
    %v641 = vunpack.c.h.b16 %v323
    %v642 = vunpack.c.l.b16 %v324
    %v643 = vunpack.c.h.b16 %v324
    %v644 = vunpack.c.l.b16 %v325
    %v645 = vunpack.c.h.b16 %v325
    %v646 = vunpack.c.l.b16 %v326
    %v647 = vunpack.c.h.b16 %v326
    %v648 = vunpack.c.l.b16 %v327
    %v649 = vunpack.c.h.b16 %v327
    %v650 = vunpack.c.l.b16 %v328
    %v651 = vunpack.c.h.b16 %v328
    %v652 = vunpack.c.l.b16 %v329
    %v653 = vunpack.c.h.b16 %v329
    %v654 = vunpack.c.l.b16 %v330
    %v655 = vunpack.c.h.b16 %v330
    %v656 = vunpack.c.l.b16 %v331
    %v657 = vunpack.c.h.b16 %v331
    %v658 = vunpack.c.l.b16 %v332
    %v659 = vunpack.c.h.b16 %v332
    %v660 = vunpack.c.l.b16 %v333
    %v661 = vunpack.c.h.b16 %v333
    %v662 = vunpack.c.l.b16 %v334
    %v663 = vunpack.c.h.b16 %v334
    %v664 = vunpack.c.l.b16 %v335
    %v665 = vunpack.c.h.b16 %v335
    %v666 = vunpack.c.l.b16 %v336
    %v667 = vunpack.c.h.b16 %v336
    %v668 = vunpack.c.l.b16 %v337
    %v669 = vunpack.c.h.b16 %v337
    %v670 = vunpack.c.l.b16 %v338
    %v671 = vunpack.c.h.b16 %v338
    %v672 = vunpack.c.l.b16 %v339
    %v673 = vunpack.c.h.b16 %v339
    %v674 = vunpack.c.l.b16 %v340
    %v675 = vunpack.c.h.b16 %v340
    %v676 = vunpack.c.l.b16 %v341
    %v677 = vunpack.c.h.b16 %v341
    %v678 = vunpack.c.l.b16 %v342
    %v679 = vunpack.c.h.b16 %v342
    %v680 = vunpack.c.l.b16 %v343
    %v681 = vunpack.c.h.b16 %v343
    %v682 = vunpack.c.l.b16 %v344
    %v683 = vunpack.c.h.b16 %v344
    %v684 = vunpack.c.l.b16 %v345
    %v685 = vunpack.c.h.b16 %v345
    %v686 = vunpack.c.l.b16 %v346
    %v687 = vunpack.c.h.b16 %v346
    %v688 = vunpack.c.l.b16 %v347
    %v689 = vunpack.c.h.b16 %v347
    %v690 = vunpack.c.l.b16 %v348
    %v691 = vunpack.c.h.b16 %v348
    %v692 = vunpack.c.l.b16 %v349
    %v693 = vunpack.c.h.b16 %v349
    %v694 = vunpack.c.l.b16 %v350
    %v695 = vunpack.c.h.b16 %v350
    %v696 = vunpack.c.l.b16 %v351
    %v697 = vunpack.c.h.b16 %v351
    %v698 = vunpack.c.l.b16 %v352
    %v699 = vunpack.c.h.b16 %v352
    %v700 = vunpack.c.l.b16 %v353
    %v701 = vunpack.c.h.b16 %v353
    %v702 = vunpack.c.l.b16 %v354
    %v703 = vunpack.c.h.b16 %v354
    %v704 = vunpack.c.l.b16 %v355
    %v705 = vunpack.c.h.b16 %v355
    %v706 = vunpack.c.l.b16 %v356
    %v707 = vunpack.c.h.b16 %v356
    %v708 = vunpack.c.l.b16 %v357
    %v709 = vunpack.c.h.b16 %v357
    %v710 = vunpack.c.l.b16 %v358
    %v711 = vunpack.c.h.b16 %v358
    %v712 = vunpack.c.l.b16 %v359
    %v713 = vunpack.c.h.b16 %v359
    %v714 = vunpack.c.l.b16 %v360
    %v715 = vunpack.c.h.b16 %v360
    %v716 = vunpack.c.l.b16 %v361
    %v717 = vunpack.c.h.b16 %v361
    %v718 = vunpack.c.l.b16 %v362
    %v719 = vunpack.c.h.b16 %v362
    %v720 = vunpack.c.l.b16 %v363
    %v721 = vunpack.c.h.b16 %v363
    %v722 = vunpack.c.l.b16 %v364
    %v723 = vunpack.c.h.b16 %v364
    %v724 = vunpack.c.l.b16 %v365
    %v725 = vunpack.c.h.b16 %v365
    %v726 = vunpack.c.l.b16 %v366
    %v727 = vunpack.c.h.b16 %v366
    %v728 = vunpack.c.l.b16 %v367
    %v729 = vunpack.c.h.b16 %v367
    %v730 = vunpack.c.l.b16 %v368
    %v731 = vunpack.c.h.b16 %v368
    %v732 = vunpack.c.l.b16 %v369
    %v733 = vunpack.c.h.b16 %v369
    %v734 = vunpack.c.l.b16 %v370
    %v735 = vunpack.c.h.b16 %v370
    %v736 = vunpack.c.l.b16 %v371
    %v737 = vunpack.c.h.b16 %v371
    %v738 = vunpack.c.l.b16 %v372
    %v739 = vunpack.c.h.b16 %v372
    %v740 = vunpack.c.l.b16 %v373
    %v741 = vunpack.c.h.b16 %v373
    %v742 = vunpack.c.l.b16 %v374
    %v743 = vunpack.c.h.b16 %v374
    %v744 = vunpack.c.l.b16 %v375
    %v745 = vunpack.c.h.b16 %v375
    %v746 = vunpack.c.l.b16 %v376
    %v747 = vunpack.c.h.b16 %v376
    %v748 = vunpack.c.l.b16 %v377
    %v749 = vunpack.c.h.b16 %v377
    %v750 = vunpack.c.l.b16 %v378
    %v751 = vunpack.c.h.b16 %v378
    %v752 = vunpack.c.l.b16 %v379
    %v753 = vunpack.c.h.b16 %v379
    %v754 = vunpack.c.l.b16 %v380
    %v755 = vunpack.c.h.b16 %v380
    %v756 = vunpack.c.l.b16 %v381
    %v757 = vunpack.c.h.b16 %v381
    %v758 = vunpack.c.l.b16 %v382
    %v759 = vunpack.c.h.b16 %v382
    %v760 = vunpack.c.l.b16 %v383
    %v761 = vunpack.c.h.b16 %v383
    %v762 = vunpack.c.l.b16 %v384
    %v763 = vunpack.c.h.b16 %v384
    %v764 = vunpack.c.l.b16 %v385
    %v765 = vunpack.c.h.b16 %v385
    %v766 = vunpack.c.l.b16 %v386
    %v767 = vunpack.c.h.b16 %v386
    %v768 = vunpack.c.l.b16 %v387
    %v769 = vunpack.c.h.b16 %v387
    %v770 = vunpack.c.l.b16 %v388
    %v771 = vunpack.c.h.b16 %v388
    %v772 = vunpack.c.l.b16 %v389
    %v773 = vunpack.c.h.b16 %v389
    %v774 = vunpack.c.l.b16 %v390
    %v775 = vunpack.c.h.b16 %v390
    %v776 = vunpack.c.l.b16 %v391
    %v777 = vunpack.c.h.b16 %v391
    %v778 = vunpack.c.l.b16 %v392
    %v779 = vunpack.c.h.b16 %v392
    %v780 = vunpack.c.l.b16 %v393
    %v781 = vunpack.c.h.b16 %v393
    %v782 = vunpack.c.l.b16 %v394
    %v783 = vunpack.c.h.b16 %v394
    %v784 = vunpack.c.l.b16 %v395
    %v785 = vunpack.c.h.b16 %v395
    %v786 = vunpack.c.l.b16 %v396
    %v787 = vunpack.c.h.b16 %v396
    %v788 = vunpack.c.l.b16 %v397
    %v789 = vunpack.c.h.b16 %v397
    %v790 = vunpack.c.l.b16 %v398
    %v791 = vunpack.c.h.b16 %v398
    %v792 = vunpack.c.l.b16 %v399
    %v793 = vunpack.c.h.b16 %v399
    %v794 = vunpack.c.l.b16 %v400
    %v795 = vunpack.c.h.b16 %v400
    %v796 = vunpack.c.l.b16 %v401
    %v797 = vunpack.c.h.b16 %v401
    %v798 = vunpack.c.l.b16 %v402
    %v799 = vunpack.c.h.b16 %v402
    %v800 = vunpack.c.l.b16 %v403
    %v801 = vunpack.c.h.b16 %v403
    %v802 = vunpack.c.l.b16 %v404
    %v803 = vunpack.c.h.b16 %v404
    %v804 = vunpack.c.l.b16 %v405
    %v805 = vunpack.c.h.b16 %v405
    %v806 = vunpack.c.l.b16 %v406
    %v807 = vunpack.c.h.b16 %v406
    %v808 = vunpack.c.l.b16 %v407
    %v809 = vunpack.c.h.b16 %v407
    %v810 = vunpack.c.l.b16 %v408
    %v811 = vunpack.c.h.b16 %v408
    %v812 = vunpack.c.l.b16 %v409
    %v813 = vunpack.c.h.b16 %v409
    %v814 = vunpack.c.l.b16 %v410
    %v815 = vunpack.c.h.b16 %v410
    %v816 = vunpack.c.l.b16 %v411
    %v817 = vunpack.c.h.b16 %v411
    %v818 = vpack.c.b16 %v566, %v562
    %v819 = vpack.c.b16 %v567, %v563
    %v820 = vpack.c.b16 %v568, %v564
    %v821 = vpack.c.b16 %v569, %v565
    %v822 = vpack.c.b16 %v574, %v570
    %v823 = vpack.c.b16 %v575, %v571
    %v824 = vpack.c.b16 %v576, %v572
    %v825 = vpack.c.b16 %v577, %v573
    %v826 = vpack.c.b16 %v582, %v578
    %v827 = vpack.c.b16 %v583, %v579
    %v828 = vpack.c.b16 %v584, %v580
    %v829 = vpack.c.b16 %v585, %v581
    %v830 = vpack.c.b16 %v590, %v586
    %v831 = vpack.c.b16 %v591, %v587
    %v832 = vpack.c.b16 %v592, %v588
    %v833 = vpack.c.b16 %v593, %v589
    %v834 = vpack.c.b16 %v598, %v594
    %v835 = vpack.c.b16 %v599, %v595
    %v836 = vpack.c.b16 %v600, %v596
    %v837 = vpack.c.b16 %v601, %v597
    %v838 = vpack.c.b16 %v606, %v602
    %v839 = vpack.c.b16 %v607, %v603
    %v840 = vpack.c.b16 %v608, %v604
    %v841 = vpack.c.b16 %v609, %v605
    %v842 = vpack.c.b16 %v614, %v610
    %v843 = vpack.c.b16 %v615, %v611
    %v844 = vpack.c.b16 %v616, %v612
    %v845 = vpack.c.b16 %v617, %v613
    %v846 = vpack.c.b16 %v622, %v618
    %v847 = vpack.c.b16 %v623, %v619
    %v848 = vpack.c.b16 %v624, %v620
    %v849 = vpack.c.b16 %v625, %v621
    %v850 = vpack.c.b16 %v630, %v626
    %v851 = vpack.c.b16 %v631, %v627
    %v852 = vpack.c.b16 %v632, %v628
    %v853 = vpack.c.b16 %v633, %v629
    %v854 = vpack.c.b16 %v638, %v634
    %v855 = vpack.c.b16 %v639, %v635
    %v856 = vpack.c.b16 %v640, %v636
    %v857 = vpack.c.b16 %v641, %v637
    %v858 = vpack.c.b16 %v646, %v642
    %v859 = vpack.c.b16 %v647, %v643
    %v860 = vpack.c.b16 %v648, %v644
    %v861 = vpack.c.b16 %v649, %v645
    %v862 = vpack.c.b16 %v654, %v650
    %v863 = vpack.c.b16 %v655, %v651
    %v864 = vpack.c.b16 %v656, %v652
    %v865 = vpack.c.b16 %v657, %v653
    %v866 = vpack.c.b16 %v662, %v658
    %v867 = vpack.c.b16 %v663, %v659
    %v868 = vpack.c.b16 %v664, %v660
    %v869 = vpack.c.b16 %v665, %v661
    %v870 = vpack.c.b16 %v670, %v666
    %v871 = vpack.c.b16 %v671, %v667
    %v872 = vpack.c.b16 %v672, %v668
    %v873 = vpack.c.b16 %v673, %v669
    %v874 = vpack.c.b16 %v678, %v674
    %v875 = vpack.c.b16 %v679, %v675
    %v876 = vpack.c.b16 %v680, %v676
    %v877 = vpack.c.b16 %v681, %v677
    %v878 = vpack.c.b16 %v686, %v682
    %v879 = vpack.c.b16 %v687, %v683
    %v880 = vpack.c.b16 %v688, %v684
    %v881 = vpack.c.b16 %v689, %v685
    %v882 = vpack.c.b16 %v694, %v690
    %v883 = vpack.c.b16 %v695, %v691
    %v884 = vpack.c.b16 %v696, %v692
    %v885 = vpack.c.b16 %v697, %v693
    %v886 = vpack.c.b16 %v702, %v698
    %v887 = vpack.c.b16 %v703, %v699
    %v888 = vpack.c.b16 %v704, %v700
    %v889 = vpack.c.b16 %v705, %v701
    %v890 = vpack.c.b16 %v710, %v706
    %v891 = vpack.c.b16 %v711, %v707
    %v892 = vpack.c.b16 %v712, %v708
    %v893 = vpack.c.b16 %v713, %v709
    %v894 = vpack.c.b16 %v718, %v714
    %v895 = vpack.c.b16 %v719, %v715
    %v896 = vpack.c.b16 %v720, %v716
    %v897 = vpack.c.b16 %v721, %v717
    %v898 = vpack.c.b16 %v726, %v722
    %v899 = vpack.c.b16 %v727, %v723
    %v900 = vpack.c.b16 %v728, %v724
    %v901 = vpack.c.b16 %v729, %v725
    %v902 = vpack.c.b16 %v734, %v730
    %v903 = vpack.c.b16 %v735, %v731
    %v904 = vpack.c.b16 %v736, %v732
    %v905 = vpack.c.b16 %v737, %v733
    %v906 = vpack.c.b16 %v742, %v738
    %v907 = vpack.c.b16 %v743, %v739
    %v908 = vpack.c.b16 %v744, %v740
    %v909 = vpack.c.b16 %v745, %v741
    %v910 = vpack.c.b16 %v750, %v746
    %v911 = vpack.c.b16 %v751, %v747
    %v912 = vpack.c.b16 %v752, %v748
    %v913 = vpack.c.b16 %v753, %v749
    %v914 = vpack.c.b16 %v758, %v754
    %v915 = vpack.c.b16 %v759, %v755
    %v916 = vpack.c.b16 %v760, %v756
    %v917 = vpack.c.b16 %v761, %v757
    %v918 = vpack.c.b16 %v766, %v762
    %v919 = vpack.c.b16 %v767, %v763
    %v920 = vpack.c.b16 %v768, %v764
    %v921 = vpack.c.b16 %v769, %v765
    %v922 = vpack.c.b16 %v774, %v770
    %v923 = vpack.c.b16 %v775, %v771
    %v924 = vpack.c.b16 %v776, %v772
    %v925 = vpack.c.b16 %v777, %v773
    %v926 = vpack.c.b16 %v782, %v778
    %v927 = vpack.c.b16 %v783, %v779
    %v928 = vpack.c.b16 %v784, %v780
    %v929 = vpack.c.b16 %v785, %v781
    %v930 = vpack.c.b16 %v790, %v786
    %v931 = vpack.c.b16 %v791, %v787
    %v932 = vpack.c.b16 %v792, %v788
    %v933 = vpack.c.b16 %v793, %v789
    %v934 = vpack.c.b16 %v798, %v794
    %v935 = vpack.c.b16 %v799, %v795
    %v936 = vpack.c.b16 %v800, %v796
    %v937 = vpack.c.b16 %v801, %v797
    %v938 = vpack.c.b16 %v806, %v802
    %v939 = vpack.c.b16 %v807, %v803
    %v940 = vpack.c.b16 %v808, %v804
    %v941 = vpack.c.b16 %v809, %v805
    %v942 = vpack.c.b16 %v814, %v810
    %v943 = vpack.c.b16 %v815, %v811
    %v944 = vpack.c.b16 %v816, %v812
    %v945 = vpack.c.b16 %v817, %v813
    %1074 = vmatprep.subr.bf16.mxu0 %v819
    %1075 = vmatpush1.bf16.msra.mxu0 %v818
    %1076 = vmatprep.subr.bf16.mxu0 %v823
    %1077 = vmatpush1.bf16.msra.mxu0 %v822
    %1078 = vmatprep.subr.bf16.mxu0 %v827
    %1079 = vmatpush1.bf16.msra.mxu0 %v826
    %1080 = vmatprep.subr.bf16.mxu0 %v831
    %1081 = vmatpush1.bf16.msra.mxu0 %v830
    %1082 = vmatprep.subr.bf16.mxu0 %v835
    %1083 = vmatpush1.bf16.msra.mxu0 %v834
    %1084 = vmatprep.subr.bf16.mxu0 %v839
    %1085 = vmatpush1.bf16.msra.mxu0 %v838
    %1086 = vmatprep.subr.bf16.mxu0 %v843
    %1087 = vmatpush1.bf16.msra.mxu0 %v842
    %1088 = vmatprep.subr.bf16.mxu0 %v847
    %1089 = vmatpush1.bf16.msra.mxu0 %v846
    %1090 = vmatprep.subr.bf16.mxu0 %v851
    %1091 = vmatpush1.bf16.msra.mxu0 %v850
    %1092 = vmatprep.subr.bf16.mxu0 %v855
    %1093 = vmatpush1.bf16.msra.mxu0 %v854
    %1094 = vmatprep.subr.bf16.mxu0 %v859
    %1095 = vmatpush1.bf16.msra.mxu0 %v858
    %1096 = vmatprep.subr.bf16.mxu0 %v863
    %1097 = vmatpush1.bf16.msra.mxu0 %v862
    %1098 = vmatprep.subr.bf16.mxu0 %v867
    %1099 = vmatpush1.bf16.msra.mxu0 %v866
    %1100 = vmatprep.subr.bf16.mxu0 %v871
    %1101 = vmatpush1.bf16.msra.mxu0 %v870
    %1102 = vmatprep.subr.bf16.mxu0 %v875
    %1103 = vmatpush1.bf16.msra.mxu0 %v874
    %1104 = vmatprep.subr.bf16.mxu0 %v879
    %1105 = vmatpush1.bf16.msra.mxu0 %v878
    %1106 = vmatprep.mubr.bf16.mxu0 %v281
    %1107 = vmatmul.mubr.bf16.gmra.mrb[0].mxu0 %v280
    %v1108 = vpop.f32.mrb[0].mxu0
    %v1109 = vadd.f32 %v417, %v1108
    %v1110 = vpop.f32.mrb[0].mxu0
    %v1111 = vadd.f32 %v421, %v1110
    %v1112 = vpop.f32.mrb[0].mxu0
    %v1113 = vadd.f32 %v417, %v1112
    %v1114 = vpop.f32.mrb[0].mxu0
    %v1115 = vadd.f32 %v421, %v1114
    %1116 = vdwg.mxu0
    %1117 = vmatprep.subr.bf16.mxu0 %v883
    %1118 = vmatpush1.bf16.msra.mxu0 %v882
    %1119 = vmatprep.subr.bf16.mxu0 %v887
    %1120 = vmatpush1.bf16.msra.mxu0 %v886
    %1121 = vmatprep.subr.bf16.mxu0 %v891
    %1122 = vmatpush1.bf16.msra.mxu0 %v890
    %1123 = vmatprep.subr.bf16.mxu0 %v895
    %1124 = vmatpush1.bf16.msra.mxu0 %v894
    %1125 = vmatprep.subr.bf16.mxu0 %v899
    %1126 = vmatpush1.bf16.msra.mxu0 %v898
    %1127 = vmatprep.subr.bf16.mxu0 %v903
    %1128 = vmatpush1.bf16.msra.mxu0 %v902
    %1129 = vmatprep.subr.bf16.mxu0 %v907
    %1130 = vmatpush1.bf16.msra.mxu0 %v906
    %1131 = vmatprep.subr.bf16.mxu0 %v911
    %1132 = vmatpush1.bf16.msra.mxu0 %v910
    %1133 = vmatprep.subr.bf16.mxu0 %v915
    %1134 = vmatpush1.bf16.msra.mxu0 %v914
    %1135 = vmatprep.subr.bf16.mxu0 %v919
    %1136 = vmatpush1.bf16.msra.mxu0 %v918
    %1137 = vmatprep.subr.bf16.mxu0 %v923
    %1138 = vmatpush1.bf16.msra.mxu0 %v922
    %1139 = vmatprep.subr.bf16.mxu0 %v927
    %1140 = vmatpush1.bf16.msra.mxu0 %v926
    %1141 = vmatprep.subr.bf16.mxu0 %v931
    %1142 = vmatpush1.bf16.msra.mxu0 %v930
    %1143 = vmatprep.subr.bf16.mxu0 %v935
    %1144 = vmatpush1.bf16.msra.mxu0 %v934
    %1145 = vmatprep.subr.bf16.mxu0 %v939
    %1146 = vmatpush1.bf16.msra.mxu0 %v938
    %1147 = vmatprep.subr.bf16.mxu0 %v943
    %1148 = vmatpush1.bf16.msra.mxu0 %v942
    %1149 = vmatprep.mubr.bf16.mxu0 %v283
    %1150 = vmatmul.mubr.bf16.gmra.mrb[0].mxu0 %v282
    %v1151 = vpop.f32.mrb[0].mxu0
    %v1152 = vadd.f32 %v1109, %v1151
    %v1153 = vpop.f32.mrb[0].mxu0
    %v1154 = vadd.f32 %v1111, %v1153
    %v1155 = vpop.f32.mrb[0].mxu0
    %v1156 = vadd.f32 %v1113, %v1155
    %v1157 = vpop.f32.mrb[0].mxu0
    %v1158 = vadd.f32 %v1115, %v1157
    %1159 = vdwg.mxu0
    %1160 = vmatprep.subr.bf16.mxu0 %v821
    %1161 = vmatpush1.bf16.msra.mxu0 %v820
    %1162 = vmatprep.subr.bf16.mxu0 %v825
    %1163 = vmatpush1.bf16.msra.mxu0 %v824
    %1164 = vmatprep.subr.bf16.mxu0 %v829
    %1165 = vmatpush1.bf16.msra.mxu0 %v828
    %1166 = vmatprep.subr.bf16.mxu0 %v833
    %1167 = vmatpush1.bf16.msra.mxu0 %v832
    %1168 = vmatprep.subr.bf16.mxu0 %v837
    %1169 = vmatpush1.bf16.msra.mxu0 %v836
    %1170 = vmatprep.subr.bf16.mxu0 %v841
    %1171 = vmatpush1.bf16.msra.mxu0 %v840
    %1172 = vmatprep.subr.bf16.mxu0 %v845
    %1173 = vmatpush1.bf16.msra.mxu0 %v844
    %1174 = vmatprep.subr.bf16.mxu0 %v849
    %1175 = vmatpush1.bf16.msra.mxu0 %v848
    %1176 = vmatprep.subr.bf16.mxu0 %v853
    %1177 = vmatpush1.bf16.msra.mxu0 %v852
    %1178 = vmatprep.subr.bf16.mxu0 %v857
    %1179 = vmatpush1.bf16.msra.mxu0 %v856
    %1180 = vmatprep.subr.bf16.mxu0 %v861
    %1181 = vmatpush1.bf16.msra.mxu0 %v860
    %1182 = vmatprep.subr.bf16.mxu0 %v865
    %1183 = vmatpush1.bf16.msra.mxu0 %v864
    %1184 = vmatprep.subr.bf16.mxu0 %v869
    %1185 = vmatpush1.bf16.msra.mxu0 %v868
    %1186 = vmatprep.subr.bf16.mxu0 %v873
    %1187 = vmatpush1.bf16.msra.mxu0 %v872
    %1188 = vmatprep.subr.bf16.mxu0 %v877
    %1189 = vmatpush1.bf16.msra.mxu0 %v876
    %1190 = vmatprep.subr.bf16.mxu0 %v881
    %1191 = vmatpush1.bf16.msra.mxu0 %v880
    %1192 = vmatprep.mubr.bf16.mxu0 %v281
    %1193 = vmatmul.mubr.bf16.gmra.mrb[0].mxu0 %v280
    %v1194 = vpop.f32.mrb[0].mxu0
    %v1195 = vadd.f32 %v425, %v1194
    %v1196 = vpop.f32.mrb[0].mxu0
    %v1197 = vadd.f32 %v429, %v1196
    %v1198 = vpop.f32.mrb[0].mxu0
    %v1199 = vadd.f32 %v425, %v1198
    %v1200 = vpop.f32.mrb[0].mxu0
    %v1201 = vadd.f32 %v429, %v1200
    %1202 = vdwg.mxu0
    %1203 = vmatprep.subr.bf16.mxu0 %v885
    %1204 = vmatpush1.bf16.msra.mxu0 %v884
    %1205 = vmatprep.subr.bf16.mxu0 %v889
    %1206 = vmatpush1.bf16.msra.mxu0 %v888
    %1207 = vmatprep.subr.bf16.mxu0 %v893
    %1208 = vmatpush1.bf16.msra.mxu0 %v892
    %1209 = vmatprep.subr.bf16.mxu0 %v897
    %1210 = vmatpush1.bf16.msra.mxu0 %v896
    %1211 = vmatprep.subr.bf16.mxu0 %v901
    %1212 = vmatpush1.bf16.msra.mxu0 %v900
    %1213 = vmatprep.subr.bf16.mxu0 %v905
    %1214 = vmatpush1.bf16.msra.mxu0 %v904
    %1215 = vmatprep.subr.bf16.mxu0 %v909
    %1216 = vmatpush1.bf16.msra.mxu0 %v908
    %1217 = vmatprep.subr.bf16.mxu0 %v913
    %1218 = vmatpush1.bf16.msra.mxu0 %v912
    %1219 = vmatprep.subr.bf16.mxu0 %v917
    %1220 = vmatpush1.bf16.msra.mxu0 %v916
    %1221 = vmatprep.subr.bf16.mxu0 %v921
    %1222 = vmatpush1.bf16.msra.mxu0 %v920
    %1223 = vmatprep.subr.bf16.mxu0 %v925
    %1224 = vmatpush1.bf16.msra.mxu0 %v924
    %1225 = vmatprep.subr.bf16.mxu0 %v929
    %1226 = vmatpush1.bf16.msra.mxu0 %v928
    %1227 = vmatprep.subr.bf16.mxu0 %v933
    %1228 = vmatpush1.bf16.msra.mxu0 %v932
    %1229 = vmatprep.subr.bf16.mxu0 %v937
    %1230 = vmatpush1.bf16.msra.mxu0 %v936
    %1231 = vmatprep.subr.bf16.mxu0 %v941
    %1232 = vmatpush1.bf16.msra.mxu0 %v940
    %1233 = vmatprep.subr.bf16.mxu0 %v945
    %1234 = vmatpush1.bf16.msra.mxu0 %v944
    %1235 = vmatprep.mubr.bf16.mxu0 %v283
    %1236 = vmatmul.mubr.bf16.gmra.mrb[0].mxu0 %v282
    %v1237 = vpop.f32.mrb[0].mxu0
    %v1238 = vadd.f32 %v1195, %v1237
    %v1239 = vpop.f32.mrb[0].mxu0
    %v1240 = vadd.f32 %v1197, %v1239
    %v1241 = vpop.f32.mrb[0].mxu0
    %v1242 = vadd.f32 %v1199, %v1241
    %v1243 = vpop.f32.mrb[0].mxu0
    %v1244 = vadd.f32 %v1201, %v1243
    %1245 = vdwg.mxu0
    %v1246 = vmax.f32 %v1152, 0.0
    %v1247 = vmax.f32 %v1154, 0.0
    %v1248 = vmax.f32 %v1238, 0.0
    %v1249 = vmax.f32 %v1240, 0.0
    %v1250 = vmax.f32 %v1156, 0.0
    %v1251 = vmax.f32 %v1158, 0.0
    %v1252 = vmax.f32 %v1242, 0.0
    %v1253 = vmax.f32 %v1244, 0.0
    %v1254 = vld [vmem:[%s6] sm:$0xf]
    %v1256 = vlaneseq
    %v1257 = vshrl.u32 %v1256, 7
    %v1258 = vsub.s32 0, %v1257
    %v1259 = vrot.slane %v1254, %v1258
    %v1260 = vlaneseq
    %v1261 = vshrl.u32 %v1260, 7
    %v1262 = vsub.s32 1, %v1261
    %v1263 = vrot.slane %v1254, %v1262
    %v1264 = vlaneseq
    %v1265 = vshrl.u32 %v1264, 7
    %v1266 = vsub.s32 2, %v1265
    %v1267 = vrot.slane %v1254, %v1266
    %v1268 = vlaneseq
    %v1269 = vshrl.u32 %v1268, 7
    %v1270 = vsub.s32 3, %v1269
    %v1271 = vrot.slane %v1254, %v1270
    %v1276 = vmul.f32 %v1246, %v1259
    %v1277 = vmul.f32 %v1247, %v1263
    %v1278 = vmul.f32 %v1248, %v1267
    %v1279 = vmul.f32 %v1249, %v1271
    %v1280 = vmul.f32 %v1250, %v1259
    %v1281 = vmul.f32 %v1251, %v1263
    %v1282 = vmul.f32 %v1252, %v1267
    %v1283 = vmul.f32 %v1253, %v1271
    %v1284 = vadd.f32 %v1276, %v1277
    %v1285 = vadd.f32 %v1284, %v1278
    %v1286 = vadd.f32 %v1285, %v1279
    %1287 = vadd.xlane.f32.xlu0 %v1286
    %v1288 = vpop.xlane.xlu0 %1287
    %v1289 = vadd.f32 %v1280, %v1281
    %v1290 = vadd.f32 %v1289, %v1282
    %v1291 = vadd.f32 %v1290, %v1283
    %1292 = vadd.xlane.f32.xlu0 %v1291
    %v1293 = vpop.xlane.xlu0 %1292
    %v1294 = vld [vmem:[#allocation3] sm:$0x1]
    %v1296 = vlaneseq
    %v1297 = vshrl.u32 %v1296, 7
    %v1298 = vsub.s32 0, %v1297
    %v1299 = vrot.slane %v1294, %v1298
    %v1301 = vadd.f32 %v1288, %v1299
    %v1302 = vadd.f32 %v1293, %v1299
    %v1303 = vxor.u32 %v1301, 2147483648
    %v1304 = vxor.u32 %v1302, 2147483648
    %v1305 = vmul.f32 %v1303, 1.442695
    %v1306 = vpow.pop %v1305
    %v1307 = vmul.f32 %v1304, 1.442695
    %v1308 = vpow.pop %v1307
    %v1309 = vadd.f32 %v1306, 1.0
    %v1310 = vadd.f32 %v1308, 1.0
    %v1311 = vrcp.pop %v1309
    %v1312 = vmul.f32 1.0, %v1311
    %v1313 = vrcp.pop %v1310
    %v1314 = vmul.f32 1.0, %v1313
    %vm1315 = vcmask 7168
    %1316 = vst.msk [vmem:[#allocation8] sm:$0xff] %vm1315, %v1312
    %1317 = vst.msk [vmem:[#allocation8 + $0x8] sm:$0xff] %vm1315, %v1314
    // Predicated region
    $region42: #{discriminator_forward.1} parent=1 // pred_check
      _
    $region43: #{discriminator_forward.1} parent=1 // pred_check_branch
      %1319 = sbr.rel (0) target = $region45
    $region44: #{discriminator_forward.1} parent=1 // pred_region
      // Predicated region
      $region46: #{discriminator_forward.1} parent=44 // pred_check
        _
      $region47: #{discriminator_forward.1} parent=44 // pred_check_branch
        %1321 = sbr.rel (0) target = $region49
      $region48: #{discriminator_forward.1} parent=44 // pred_region
        // Predicated region
        $region50: #{discriminator_forward.1} parent=48 // pred_check
          _
        $region51: #{discriminator_forward.1} parent=48 // pred_check_branch
          %1323 = sbr.rel target = $region53
        $region52: #{discriminator_forward.1} parent=48 // pred_region
          // Predicated region
          $region65: #{discriminator_forward.1} parent=52 // pred_check
            _
          $region66: #{discriminator_forward.1} parent=52 // pred_check_branch
            %1338 = sbr.rel (0) target = $region68
          $region67: #{discriminator_forward.1} parent=52 // pred_region
            loop: start=0, step=1, limit=1
            $region69: #{discriminator_forward.1} parent=67 // loop_pre_header
              _
            $region70: #{discriminator_forward.1} parent=67 // loop_header
              %s1341 = sphi 0, %s1345
              %p1342 = scmp.ge.s32.totalorder %s1341, 1
              %s1346 = sphi [#allocation8], [#allocation8]
              %s1347 = sphi %s8, %s8
            $region71: #{discriminator_forward.1} parent=67 // loop_header_branch
              %1344 = sbr.rel (%p1342) target = $region75
            $region72: #{discriminator_forward.1} parent=67 // loop_body
              %v1348 = vld [vmem:[%s1346] sm:$0x3]
              %1349 = vst [vmem:[%s1347] sm:$0x3] %v1348
            $region73: #{discriminator_forward.1} parent=67 // loop_footer
              %s1345 = sadd.s32 1, %s1341
            $region74: #{discriminator_forward.1} parent=67 // loop_footer_branch
              %1340 = sbr.rel target = $region70
            $region75: #{discriminator_forward.1} parent=67 // loop_exit
              _
          $region68: #{discriminator_forward.1} parent=52 // pred_fallthru
            _
        $region53: #{discriminator_forward.1} parent=48 // pred_fallthru
          _
        // Predicated region
        $region54: #{discriminator_forward.1} parent=48 // pred_check
          _
        $region55: #{discriminator_forward.1} parent=48 // pred_check_branch
          %1325 = sbr.rel (0) target = $region57
        $region56: #{discriminator_forward.1} parent=48 // pred_region
          loop: start=0, step=1, limit=1
          $region58: #{discriminator_forward.1} parent=56 // loop_pre_header
            _
          $region59: #{discriminator_forward.1} parent=56 // loop_header
            %s1328 = sphi 0, %s1332
            %p1329 = scmp.ge.s32.totalorder %s1328, 1
            %s1333 = sphi [#allocation8], [#allocation8]
            %s1334 = sphi %s8, %s8
          $region60: #{discriminator_forward.1} parent=56 // loop_header_branch
            %1331 = sbr.rel (%p1329) target = $region64
          $region61: #{discriminator_forward.1} parent=56 // loop_body
            %v1335 = vld [vmem:[%s1333] sm:$0x3]
            %1336 = vst [vmem:[%s1334] sm:$0x3] %v1335
          $region62: #{discriminator_forward.1} parent=56 // loop_footer
            %s1332 = sadd.s32 1, %s1328
          $region63: #{discriminator_forward.1} parent=56 // loop_footer_branch
            %1327 = sbr.rel target = $region59
          $region64: #{discriminator_forward.1} parent=56 // loop_exit
            _
        $region57: #{discriminator_forward.1} parent=48 // pred_fallthru
          _
      $region49: #{discriminator_forward.1} parent=44 // pred_fallthru
        _
      %1350 = vnop
    $region45: #{discriminator_forward.1} parent=1 // pred_fallthru
      _
    // Predicated region
    $region76: #{discriminator_forward.1} parent=1 // pred_check
      _
    $region77: #{discriminator_forward.1} parent=1 // pred_check_branch
      %1352 = sbr.rel (0) target = $region79
    $region78: #{discriminator_forward.1} parent=1 // pred_region
      _
    $region79: #{discriminator_forward.1} parent=1 // pred_fallthru
      _
    %1353 = vsyncpa [#allocation5], 1
    %1354 = vsyncpa [#allocation7], 1

</llo_original>
